<compile_context>
chip_gen: v6e
topology: v6e:2x2x1
jax: 0.10.0
libtpu: 0.0.40
codegen_flags: <defaults>
</compile_context>

<pallas_src>
import math

import jax
import jax.numpy as jnp
from jax.experimental import pallas as pl
from jax.experimental.pallas import tpu as pltpu


def _e_linear_kernel(x_ref, w_ref, o_ref):
    # Elementwise multiply; the (1, L) weight row broadcasts over the sublane axis.
    o_ref[...] = (x_ref[...] * w_ref[...]).astype(o_ref.dtype)


def _vmem_capacity_bytes() -> int:
    """Per-core VMEM capacity; conservative 64 MiB fallback (valid everywhere)."""
    try:
        cap = int(pltpu.get_tpu_info().vmem_capacity_bytes)
        if 16 * 1024 * 1024 <= cap <= 160 * 1024 * 1024:
            return cap
    except Exception:
        pass
    return 64 * 1024 * 1024


def _run_2d(x2d: jax.Array, w_row: jax.Array) -> jax.Array:
    """Dispatch the Pallas kernel on a 2-D slab (rows_f, lanes) with w_row (1, lanes)."""
    rows_f, lanes = x2d.shape
    dtype = x2d.dtype
    itemsize = jnp.dtype(dtype).itemsize
    sublane = {4: 8, 2: 16, 1: 32}.get(itemsize, 8)

    # --- Generation-aware VMEM budget / tile sizing.
    vmem_cap = _vmem_capacity_bytes()
    vmem_limit = min(int(vmem_cap * 0.70), 96 * 1024 * 1024)
    # 2 input buffers + 2 output buffers (double-buffered) + weight + compiler
    # scratch must fit under vmem_limit -> target each tile at ~limit/6.
    target_tile_bytes = max(vmem_limit // 6, 512 * 1024)

    # --- Lane tiling only when even a single sublane-row of the full lane
    # extent would blow the tile budget (very wide feature dims).
    full_stripe_bytes = lanes * itemsize * sublane
    if full_stripe_bytes <= target_tile_bytes or lanes % 128 != 0:
        # NOTE: if lanes is huge AND not a multiple of 128 we cannot legally
        # lane-tile; we fall back to a full-lanes block and rely on the larger
        # vmem_limit.  (Pathological; fine for any realistic out_features.)
        tl = lanes
    else:
        tl = ((target_tile_bytes // (sublane * itemsize)) // 128) * 128
        tl = min(lanes, max(128, tl))

    # --- Row tile: dtype-aligned sublane multiple filling the tile budget.
    tr = ((target_tile_bytes // max(tl * itemsize, 1)) // sublane) * sublane
    tr = max(sublane, tr)
    if tr >= rows_f:
        tr = rows_f  # block == full dim is always legal
        if tl == lanes and rows_f >= 2 * sublane:
            # Split the single tile in two so both TensorCores get work on v7x
            # (megacore sharding of the "parallel" axis).
            tr = ((pl.cdiv(rows_f, 2) + sublane - 1) // sublane) * sublane

    grid_r = pl.cdiv(rows_f, tr)
    grid_l = pl.cdiv(lanes, tl)

    cost = pl.CostEstimate(
        flops=rows_f * lanes,
        transcendentals=0,
        bytes_accessed=2 * rows_f * lanes * itemsize + lanes * itemsize,
    )

    if grid_l == 1:
        grid = (grid_r,)
        in_specs = [
            pl.BlockSpec((tr, lanes), lambda i: (i, 0)),
            # Constant block index -> fetched once, stays resident in VMEM.
            pl.BlockSpec((1, lanes), lambda i: (0, 0)),
        ]
        out_specs = pl.BlockSpec((tr, lanes), lambda i: (i, 0))
        dims = ("parallel",)
    else:
        # Row axis is the fast (inner) grid axis so the weight block index is
        # constant along it and only changes per lane-stripe.
        grid = (grid_l, grid_r)
        in_specs = [
            pl.BlockSpec((tr, tl), lambda j, i: (i, j)),
            pl.BlockSpec((1, tl), lambda j, i: (0, j)),
        ]
        out_specs = pl.BlockSpec((tr, tl), lambda j, i: (i, j))
        dims = ("parallel", "parallel")

    return pl.pallas_call(
        _e_linear_kernel,
        out_shape=jax.ShapeDtypeStruct((rows_f, lanes), dtype),
        grid_spec=pltpu.PrefetchScalarGridSpec(
            num_scalar_prefetch=0,
            grid=grid,
            in_specs=in_specs,
            out_specs=out_specs,
        ),
        compiler_params=pltpu.CompilerParams(
            dimension_semantics=dims,
            vmem_limit_bytes=vmem_limit,
        ),
        cost_estimate=cost,
    )(x2d, w_row)


def e_linear(inp: jax.Array, w: jax.Array) -> jax.Array:
    """Pallas implementation of E_Linear.forward: inp * w (broadcast on last dim)."""
    feat = w.shape[0]
    assert inp.shape[-1] == feat, "last dim of inp must equal out_features"
    orig_shape = inp.shape
    dtype = inp.dtype
    w = w.astype(dtype)

    # Flatten all leading dims into rows; features stay on the lane axis.
    x2d = inp.reshape(-1, feat)
    rows = x2d.shape[0]

    # --- Lane-dense fold factor: widen the lane axis to a multiple of 128 when
    # the feature dim is not 128-aligned (avoids masked vst.msk partial stores).
    k = 1
    if feat % 128 != 0:
        k_align = 128 // math.gcd(feat, 128)
        if k_align > 1 and rows >= k_align:
            k = k_align

    if k == 1:
        out2d = _run_2d(x2d, w.reshape(1, feat))
        return out2d.reshape(orig_shape)

    lanes = k * feat
    # NOTE: jit the caller to fold this tile into the graph (no per-call HBM op).
    w_row = jnp.tile(w, k).reshape(1, lanes)

    rows_main = (rows // k) * k
    x_main = x2d[:rows_main].reshape(rows_main // k, lanes)
    out_main = _run_2d(x_main, w_row).reshape(rows_main, feat)

    if rows_main == rows:
        out2d = out_main
    else:
        # Tiny remainder (< k rows): plain JAX, then stitch.  Keeps the bulk of
        # the tensor on the lane-dense fast path.
        out_rem = x2d[rows_main:] * w
        out2d = jnp.concatenate([out_main, out_rem], axis=0)
    return out2d.reshape(orig_shape)


def init_e_linear_params(key, out_features: int) -> jax.Array:
    """Deterministic init matching Basic.reset_parameters:
    uniform(-stdv, stdv) with stdv = 1/sqrt(out_features)."""
    stdv = 1.0 / math.sqrt(out_features) if out_features > 0 else 0.0
    return jax.random.uniform(
        key, (out_features,), minval=-stdv, maxval=stdv, dtype=jnp.float32
    )


if __name__ == "__main__":
    key = jax.random.PRNGKey(0)
    k_x, k_w, k_x2 = jax.random.split(key, 3)

    batch, seq, out_features = 2, 8, 32
    # E_Linear's forward only uses w (shape (out_features,)); inp's last dim
    # must broadcast with it.
    x = jax.random.normal(k_x, (batch, seq, out_features), dtype=jnp.float32)
    w = init_e_linear_params(k_w, out_features)

    out = jax.block_until_ready(e_linear(x, w))
    ref = x * w
    assert out.shape == x.shape and out.dtype == x.dtype
    assert jnp.allclose(out, ref, atol=1e-6, rtol=1e-6)

    # bf16 path (weight cast happens in the wrapper).
    x_bf16 = x.astype(jnp.bfloat16)
    out_bf16 = jax.block_until_ready(e_linear(x_bf16, w))
    ref_bf16 = x_bf16 * w.astype(jnp.bfloat16)
    assert out_bf16.dtype == jnp.bfloat16
    assert jnp.allclose(out_bf16.astype(jnp.float32),
                        ref_bf16.astype(jnp.float32), atol=1e-3, rtol=1e-2)

    # Odd leading extent (rows = 15, fold k = 4): exercises the fold-prefix +
    # plain-JAX remainder path.
    x_odd = jax.random.normal(k_x2, (3, 5, out_features), dtype=jnp.float32)
    out_odd = jax.block_until_ready(e_linear(x_odd, w))
    assert jnp.allclose(out_odd, x_odd * w, atol=1e-6, rtol=1e-6)

    print("KERNEL_OK")
</pallas_src>

<mosaic_0001>
module attributes {stable_mosaic.version = 11 : i64} {
  func.func @_e_linear_kernel(%arg0: i32, %arg1: memref<4x128xf32, #tpu.memory_space<vmem>>, %arg2: memref<1x128xf32, #tpu.memory_space<vmem>>, %arg3: memref<4x128xf32, #tpu.memory_space<vmem>>) attributes {dimension_semantics = [#tpu.dimension_semantics<parallel>], iteration_bounds = array<i64: 1>, scalar_prefetch = 0 : i64, scratch_operands = 0 : i64, tpu.core_type = #tpu.core_type<tc>, window_params = [{transform_indices = @transform_0, window_bounds = array<i64: 4, 128>}, {pipeline_mode = #tpu.pipeline_mode<synchronous>, transform_indices = @transform_1, window_bounds = array<i64: 1, 128>}, {transform_indices = @transform_2, window_bounds = array<i64: 4, 128>}]} {
    %c0 = arith.constant 0 : index
    %c0_0 = arith.constant 0 : index
    %0 = vector.load %arg1[%c0, %c0_0] : memref<4x128xf32, #tpu.memory_space<vmem>>, vector<4x128xf32>
    %c0_1 = arith.constant 0 : index
    %c0_2 = arith.constant 0 : index
    %1 = vector.load %arg2[%c0_1, %c0_2] : memref<1x128xf32, #tpu.memory_space<vmem>>, vector<1x128xf32>
    %2 = vector.broadcast %1 : vector<1x128xf32> to vector<4x128xf32>
    %3 = arith.mulf %0, %2 : vector<4x128xf32>
    %c0_3 = arith.constant 0 : index
    %c0_4 = arith.constant 0 : index
    %4 = vector.load %arg3[%c0_3, %c0_4] : memref<4x128xf32, #tpu.memory_space<vmem>>, vector<4x128xf32>
    tpu.vector_store %arg3[%c0_3, %c0_4], %3 {strides = array<i32>} : memref<4x128xf32, #tpu.memory_space<vmem>>, vector<4x128xf32>,
    return
  }
  func.func @transform_0(%arg0: i32) -> (i32, i32) {
    %c0_i32 = arith.constant 0 : i32
    %c0_i32_0 = arith.constant 0 : i32
    return %arg0, %c0_i32 : i32, i32
  }
  func.func @transform_1(%arg0: i32) -> (i32, i32) {
    %c0_i32 = arith.constant 0 : i32
    %c0_i32_0 = arith.constant 0 : i32
    %c0_i32_1 = arith.constant 0 : i32
    return %c0_i32, %c0_i32_0 : i32, i32
  }
  func.func @transform_2(%arg0: i32) -> (i32, i32) {
    %c0_i32 = arith.constant 0 : i32
    %c0_i32_0 = arith.constant 0 : i32
    return %arg0, %c0_i32 : i32, i32
  }
}

</mosaic_0001>

<llo_original>
// kernel: tpu_custom_call.1
$region0: #{tpu_custom_call.1}
  #allocation0 [shape = 'u32[]', space=smem, size = 0x4, offset = 0x4, fixed_abs, tag = 'smem constant byte address 0x4 - core index']
  #allocation1 [shape = 'u32[144,128]{1,0:T(1,128)}', space=vmem, size = 0x12000, scoped, tag = 'internal scratch']
  %s0 = inlined_call_operand.hbm [shape: f32[4,128], index: 0, kind: input, shape index: {}]
  %s1 = inlined_call_operand.vmem [shape: f32[1,128], index: 1, kind: input, shape index: {}]
  %s2 = inlined_call_operand.hbm [shape: f32[4,128], index: 2, kind: output, shape index: {}]
  %s3 = sld [smem:[#allocation0]]
  $region22: #{tpu_custom_call.1} parent=0
    _
  %s5 = ssub.s32 1, %s3
  %s6 = scalar_select 0, %s5, %s3
  $region1: #{tpu_custom_call.1} parent=0
    #allocation2 [shape = 'u8[2048]{0}', space=vmem, size = 0x800, scoped, tag = 'input window, operand 0, single buffered']
    #allocation3 [shape = 's32[1]{0}', space=sflag, size = 0x4, scoped, tag = 'scoped memory for tpu_custom_call.1']
    #allocation4 [shape = 's32[1]{0}', space=sflag, size = 0x4, scoped, tag = 'scoped memory for tpu_custom_call.1']
    #allocation5 [shape = 'u8[2048]{0}', space=vmem, size = 0x800, scoped, tag = 'output window, operand 0, single buffered']
    %7 = vsyncpa [#allocation3], 0
    %8 = vsyncpa [#allocation4], 0
    // Predicated region
    $region2: #{tpu_custom_call.1} parent=1 // pred_check
      _
    $region3: #{tpu_custom_call.1} parent=1 // pred_check_branch
      %10 = sbr.rel (0) target = $region5
    $region4: #{tpu_custom_call.1} parent=1 // pred_region
      %s12 = ssub.s32 64, 64
      %13 = vsyncadd [#allocation3], %s12
      %s15 = sshll.u32 [#allocation2], 4
      %s16 = int_to_ptr.vmem [resolvable:$true] %s15
      %18 = dma.hbm_to_vmem [thread:$0]  %s0, 64, %s16, [#allocation3]
    $region5: #{tpu_custom_call.1} parent=1 // pred_fallthru
      _
    // Predicated region
    $region6: #{tpu_custom_call.1} parent=1 // pred_check
      _
    $region7: #{tpu_custom_call.1} parent=1 // pred_check_branch
      %20 = sbr.rel (0) target = $region9
    $region8: #{tpu_custom_call.1} parent=1 // pred_region
      _
    $region9: #{tpu_custom_call.1} parent=1 // pred_fallthru
      _
    // Predicated region
    $region10: #{tpu_custom_call.1} parent=1 // pred_check
      _
    $region11: #{tpu_custom_call.1} parent=1 // pred_check_branch
      %22 = sbr.rel (0) target = $region13
    $region12: #{tpu_custom_call.1} parent=1 // pred_region
      %23 = dma.done [#allocation3], 64
    $region13: #{tpu_custom_call.1} parent=1 // pred_fallthru
      _
    %v24 = vld [vmem:[#allocation2] sm:$0xf]
    %v25 = vld [vmem:[%s1] sm:$0x1]
    %v27 = vlaneseq
    %v28 = vshrl.u32 %v27, 7
    %v29 = vsub.s32 0, %v28
    %v30 = vrot.slane %v25, %v29
    %v32 = vmul.f32 %v24, %v30
    %33 = vst [vmem:[#allocation5] sm:$0xf] %v32
    // Predicated region
    $region14: #{tpu_custom_call.1} parent=1 // pred_check
      _
    $region15: #{tpu_custom_call.1} parent=1 // pred_check_branch
      %35 = sbr.rel (0) target = $region17
    $region16: #{tpu_custom_call.1} parent=1 // pred_region
      %s37 = ssub.s32 64, 64
      %38 = vsyncadd [#allocation4], %s37
      %s40 = sshll.u32 [#allocation5], 4
      %s41 = int_to_ptr.vmem [resolvable:$true] %s40
      %43 = dma.vmem_to_hbm [thread:$0]  %s41, 64, %s2, [#allocation4]
    $region17: #{tpu_custom_call.1} parent=1 // pred_fallthru
      _
    // Predicated region
    $region18: #{tpu_custom_call.1} parent=1 // pred_check
      _
    $region19: #{tpu_custom_call.1} parent=1 // pred_check_branch
      %45 = sbr.rel (0) target = $region21
    $region20: #{tpu_custom_call.1} parent=1 // pred_region
      %46 = dma.done [#allocation4], 64
    $region21: #{tpu_custom_call.1} parent=1 // pred_fallthru
      _
    %47 = vsyncpa [#allocation3], 1
    %48 = vsyncpa [#allocation4], 1

</llo_original>
